<compile_context>
chip_gen: v5e
topology: v5e:2x2
jax: 0.10.0
libtpu: 0.0.40
codegen_flags: <defaults>
</compile_context>

<pallas_src>
import jax
import jax.numpy as jnp
from jax import lax
from jax.experimental import pallas as pl
from jax.experimental.pallas import tpu as pltpu

EYE_FEAT_DIM = 512   # per-eye feature width  (2*512 + 2 = 1026 = fc1 in_features)
HEAD_POS_DIM = 2
FC1_OUT = 256
GAZE_DIM = 3
GAZE_PAD = 128       # fc2 output padded to a full lane group (lane-dense stores)
AUX_DIM = 8          # packed [indicator, hp0, hp1, 0, 0, 0, 0, 0]


def _round_up(x, m):
    return (x + m - 1) // m * m


# ----------------------------------------------------------------------------
# Pallas kernel: fused GazeDirmodel head (fc1 + ReLU + fc2 + L2-normalize)
# ----------------------------------------------------------------------------
def gaze_head_kernel(lf_ref, rf_ref, aux_ref,
                     w1a_ref, w1b_ref, w1c_ref, b1_ref,
                     w2_ref, b2_ref, out_ref):
    # fc1 over the (virtual) 1026-wide concat, split into aligned pieces.
    # Two 512-wide bf16 MXU passes, f32 accumulation.
    h_eyes = (jnp.dot(lf_ref[...], w1a_ref[...], preferred_element_type=jnp.float32)
              + jnp.dot(rf_ref[...], w1b_ref[...], preferred_element_type=jnp.float32))

    aux = aux_ref[...]                   # (tile_b, 8): [ind, hp0, hp1, 0...]
    ind = aux[:, 0:1]

    # Head-pos contribution: K == 2, so two broadcast FMAs on the VPU instead
    # of a mostly-zero padded MXU pass.
    w1c = w1c_ref[...]
    h_head = aux[:, 1:2] * w1c[0:1, :] + aux[:, 2:3] * w1c[1:2, :]

    # Indicator multiply folded in after the eye matmuls:
    #   (ind*lf) @ w1a + (ind*rf) @ w1b == ind * (lf @ w1a + rf @ w1b)
    h = jnp.maximum(ind * h_eyes + h_head + b1_ref[...], 0.0)   # ReLU

    # fc2 (output columns 3..127 of w2/b2 are zero => lane-dense, math unchanged)
    g = (jnp.dot(h.astype(w2_ref.dtype), w2_ref[...],
                 preferred_element_type=jnp.float32) + b2_ref[...])

    # F.normalize(p=2, dim=1, eps=1e-12) via EUP rsqrt:
    #   g * rsqrt(max(||g||^2, eps^2)) == g / max(||g||, eps)
    ss = jnp.sum(g * g, axis=1, keepdims=True)
    out_ref[...] = g * lax.rsqrt(jnp.maximum(ss, 1e-24))


def gaze_head_pallas(lf, rf, aux, w1a, w1b, w1c, b1, w2, b2, *, tile_b):
    b_pad = lf.shape[0]
    assert b_pad % tile_b == 0
    grid = (b_pad // tile_b,)

    def batch_spec(width):
        return pl.BlockSpec((tile_b, width), lambda i: (i, 0))

    def resident(arr):                   # weights/biases: DMA'd once, stay in VMEM
        return pl.BlockSpec(arr.shape, lambda i: (0, 0))

    return pl.pallas_call(
        gaze_head_kernel,
        out_shape=jax.ShapeDtypeStruct((b_pad, GAZE_PAD), jnp.float32),
        grid=grid,
        in_specs=[
            batch_spec(EYE_FEAT_DIM),    # lf  (bf16)
            batch_spec(EYE_FEAT_DIM),    # rf  (bf16)
            batch_spec(AUX_DIM),         # packed indicator + head pose (f32)
            resident(w1a), resident(w1b), resident(w1c), resident(b1),
            resident(w2), resident(b2),
        ],
        out_specs=pl.BlockSpec((tile_b, GAZE_PAD), lambda i: (i, 0)),
        compiler_params=pltpu.CompilerParams(
            dimension_semantics=("parallel",)),
    )(lf, rf, aux, w1a, w1b, w1c, b1, w2, b2)


# ----------------------------------------------------------------------------
# Glue: synthetic feature extractors (conv + GAP + fc), plain JAX
# ----------------------------------------------------------------------------
def _conv_gap_fc(x_nhwc, conv_w, conv_b, fc_w, fc_b):
    y = lax.conv_general_dilated(
        x_nhwc, conv_w, window_strides=(1, 1), padding="SAME",
        dimension_numbers=("NHWC", "HWIO", "NHWC")) + conv_b
    y = jax.nn.relu(y)
    y = y.mean(axis=(1, 2))                               # global avg pool -> (B, C)
    y = jax.nn.relu(y @ fc_w + fc_b)
    return y


def _kw(d):
    return dict(conv_w=d["cw"], conv_b=d["cb"], fc_w=d["fw"], fc_b=d["fb"])


def _extract_features(head, l_eye, r_eye, params):
    to_nhwc = lambda x: jnp.transpose(x, (0, 2, 3, 1)).astype(jnp.float32)
    lf = _conv_gap_fc(to_nhwc(l_eye), **_kw(params["leye"]))   # (B, 512)
    rf = _conv_gap_fc(to_nhwc(r_eye), **_kw(params["reye"]))   # (B, 512)
    hp = _conv_gap_fc(to_nhwc(head), **_kw(params["head"]))    # (B, 2)
    return lf, rf, hp


def _prep_head_weights(params):
    w1 = params["fc1_w"]
    w1a = w1[:EYE_FEAT_DIM].astype(jnp.bfloat16)                       # (512, 256)
    w1b = w1[EYE_FEAT_DIM:2 * EYE_FEAT_DIM].astype(jnp.bfloat16)       # (512, 256)
    w1c = w1[2 * EYE_FEAT_DIM:].astype(jnp.float32)                    # (2, 256)
    b1 = params["fc1_b"].reshape(1, FC1_OUT).astype(jnp.float32)
    w2 = jnp.zeros((FC1_OUT, GAZE_PAD), jnp.float32).at[:, :GAZE_DIM].set(
        params["fc2_w"]).astype(jnp.bfloat16)                          # (256, 128)
    b2 = jnp.zeros((1, GAZE_PAD), jnp.float32).at[:, :GAZE_DIM].set(
        params["fc2_b"].reshape(1, GAZE_DIM))                          # (1, 128)
    return w1a, w1b, w1c, b1, w2, b2


def init_params(key):
    ks = jax.random.split(key, 12)
    s = lambda k, shape, scale: (scale * jax.random.normal(k, shape)).astype(jnp.float32)
    return {
        # EyeFeatExtmodel (left / right), approximated
        "leye": {"cw": s(ks[0], (3, 3, 3, 8), 0.1), "cb": jnp.zeros((8,), jnp.float32),
                 "fw": s(ks[1], (8, EYE_FEAT_DIM), 0.2),
                 "fb": jnp.zeros((EYE_FEAT_DIM,), jnp.float32)},
        "reye": {"cw": s(ks[2], (3, 3, 3, 8), 0.1), "cb": jnp.zeros((8,), jnp.float32),
                 "fw": s(ks[3], (8, EYE_FEAT_DIM), 0.2),
                 "fb": jnp.zeros((EYE_FEAT_DIM,), jnp.float32)},
        # HeadPosExtmodel, approximated
        "head": {"cw": s(ks[4], (3, 3, 3, 8), 0.1), "cb": jnp.zeros((8,), jnp.float32),
                 "fw": s(ks[5], (8, HEAD_POS_DIM), 0.2),
                 "fb": jnp.zeros((HEAD_POS_DIM,), jnp.float32)},
        # fc1: Linear(1026, 256); fc2: Linear(256, 3)
        "fc1_w": s(ks[6], (EYE_FEAT_DIM * 2 + HEAD_POS_DIM, FC1_OUT), 0.05),
        "fc1_b": s(ks[7], (FC1_OUT,), 0.05),
        "fc2_w": s(ks[8], (FC1_OUT, GAZE_DIM), 0.05),
        "fc2_b": s(ks[9], (GAZE_DIM,), 0.05),
    }


@jax.jit
def gaze_dir_forward(head, l_eye, r_eye, indicator, params):
    lf, rf, hp = _extract_features(head, l_eye, r_eye, params)
    B = lf.shape[0]

    # Batch tiling: up to 512 rows/step (~3 MiB VMEM incl. double buffers —
    # far under even the v7x 32 MiB scoped default) to amortize the fixed
    # per-grid-step pipeline overhead; rounded to 16 so bf16 sublane packing
    # (16,128) tiles are fully populated.
    tile_b = min(512, _round_up(B, 16))
    b_pad = _round_up(B, tile_b)
    pad = b_pad - B
    pad_rows = lambda x: jnp.pad(x, ((0, pad), (0, 0)))

    lf_p = pad_rows(lf).astype(jnp.bfloat16)
    rf_p = pad_rows(rf).astype(jnp.bfloat16)

    # Pack indicator + head pose into one lane-aligned aux array -> one DMA.
    aux = jnp.concatenate(
        [indicator.reshape(B, 1).astype(jnp.float32),
         hp.astype(jnp.float32),
         jnp.zeros((B, AUX_DIM - 1 - HEAD_POS_DIM), jnp.float32)], axis=1)
    aux_p = pad_rows(aux)

    w1a, w1b, w1c, b1, w2, b2 = _prep_head_weights(params)

    out = gaze_head_pallas(lf_p, rf_p, aux_p,
                           w1a, w1b, w1c, b1, w2, b2, tile_b=tile_b)
    return out[:B, :GAZE_DIM]


# ----------------------------------------------------------------------------
# References
# ----------------------------------------------------------------------------
def gaze_dir_reference_matched(head, l_eye, r_eye, indicator, params):
    """Plain-JAX reference with the same bf16 quantization / f32 accumulation."""
    lf, rf, hp = _extract_features(head, l_eye, r_eye, params)
    w1a, w1b, w1c, b1, w2, b2 = _prep_head_weights(params)
    ind = indicator[:, None].astype(jnp.float32)
    h_eyes = (jnp.dot(lf.astype(jnp.bfloat16), w1a, preferred_element_type=jnp.float32)
              + jnp.dot(rf.astype(jnp.bfloat16), w1b, preferred_element_type=jnp.float32))
    h = jax.nn.relu(ind * h_eyes + hp @ w1c + b1)
    g = jnp.dot(h.astype(jnp.bfloat16), w2, preferred_element_type=jnp.float32) + b2
    ss = jnp.sum(g * g, axis=1, keepdims=True)
    return (g * lax.rsqrt(jnp.maximum(ss, 1e-24)))[:, :GAZE_DIM]


def gaze_dir_reference_f32(head, l_eye, r_eye, indicator, params):
    """Pure-f32 reference mirroring the original PyTorch module head."""
    lf, rf, hp = _extract_features(head, l_eye, r_eye, params)
    eyes = jnp.concatenate([lf, rf], axis=1) * indicator[:, None]
    concat = jnp.concatenate([eyes, hp], axis=1)                       # (B, 1026)
    h = jax.nn.relu(concat @ params["fc1_w"] + params["fc1_b"])
    g = h @ params["fc2_w"] + params["fc2_b"]
    nrm = jnp.sqrt(jnp.sum(g * g, axis=1, keepdims=True))
    return g / jnp.maximum(nrm, 1e-12)


if __name__ == "__main__":
    key = jax.random.PRNGKey(0)
    k_head, k_le, k_re, k_ind, k_par = jax.random.split(key, 5)

    B, C, H, W = 2, 3, 16, 16
    head = jax.random.normal(k_head, (B, C, H, W), jnp.float32)        # NCHW
    l_eye = jax.random.normal(k_le, (B, C, H, W), jnp.float32)
    r_eye = jax.random.normal(k_re, (B, C, H, W), jnp.float32)
    indicator = (jax.random.uniform(k_ind, (B,)) > 0.3).astype(jnp.float32)

    params = init_params(k_par)

    out = gaze_dir_forward(head, l_eye, r_eye, indicator, params)
    out = jax.block_until_ready(out)
    assert out.shape == (B, GAZE_DIM)

    # Tight check vs a bit-for-bit matched (bf16/f32-accum) reference.
    ref_m = gaze_dir_reference_matched(head, l_eye, r_eye, indicator, params)
    assert jnp.allclose(out, ref_m, atol=1e-4, rtol=1e-4), (out, ref_m)

    # Looser check vs the pure-f32 module semantics (bf16 weight quantization).
    ref_f = gaze_dir_reference_f32(head, l_eye, r_eye, indicator, params)
    assert jnp.allclose(out, ref_f, atol=2e-2, rtol=2e-2), (out, ref_f)

    print("KERNEL_OK")
</pallas_src>

<mosaic_0001>
module attributes {stable_mosaic.version = 11 : i64} {
  func.func @gaze_head_kernel(%arg0: i32, %arg1: memref<16x512xbf16, #tpu.memory_space<vmem>>, %arg2: memref<16x512xbf16, #tpu.memory_space<vmem>>, %arg3: memref<16x8xf32, #tpu.memory_space<vmem>>, %arg4: memref<512x256xbf16, #tpu.memory_space<vmem>>, %arg5: memref<512x256xbf16, #tpu.memory_space<vmem>>, %arg6: memref<2x256xf32, #tpu.memory_space<vmem>>, %arg7: memref<1x256xf32, #tpu.memory_space<vmem>>, %arg8: memref<256x128xbf16, #tpu.memory_space<vmem>>, %arg9: memref<1x128xf32, #tpu.memory_space<vmem>>, %arg10: memref<16x128xf32, #tpu.memory_space<vmem>>) attributes {dimension_semantics = [#tpu.dimension_semantics<parallel>], iteration_bounds = array<i64: 1>, scalar_prefetch = 0 : i64, scratch_operands = 0 : i64, tpu.core_type = #tpu.core_type<tc>, window_params = [{transform_indices = @transform_0, window_bounds = array<i64: 16, 512>}, {transform_indices = @transform_1, window_bounds = array<i64: 16, 512>}, {transform_indices = @transform_2, window_bounds = array<i64: 16, 8>}, {pipeline_mode = #tpu.pipeline_mode<synchronous>, transform_indices = @transform_3, window_bounds = array<i64: 512, 256>}, {pipeline_mode = #tpu.pipeline_mode<synchronous>, transform_indices = @transform_4, window_bounds = array<i64: 512, 256>}, {pipeline_mode = #tpu.pipeline_mode<synchronous>, transform_indices = @transform_5, window_bounds = array<i64: 2, 256>}, {pipeline_mode = #tpu.pipeline_mode<synchronous>, transform_indices = @transform_6, window_bounds = array<i64: 1, 256>}, {pipeline_mode = #tpu.pipeline_mode<synchronous>, transform_indices = @transform_7, window_bounds = array<i64: 256, 128>}, {pipeline_mode = #tpu.pipeline_mode<synchronous>, transform_indices = @transform_8, window_bounds = array<i64: 1, 128>}, {transform_indices = @transform_9, window_bounds = array<i64: 16, 128>}]} {
    %c0 = arith.constant 0 : index
    %c0_0 = arith.constant 0 : index
    %0 = vector.load %arg1[%c0, %c0_0] : memref<16x512xbf16, #tpu.memory_space<vmem>>, vector<16x512xbf16>
    %c0_1 = arith.constant 0 : index
    %c0_2 = arith.constant 0 : index
    %1 = vector.load %arg4[%c0_1, %c0_2] : memref<512x256xbf16, #tpu.memory_space<vmem>>, vector<512x256xbf16>
    %cst = arith.constant dense<0.000000e+00> : vector<16x256xf32>
    %2 = tpu.matmul %0, %1, %cst {dimension_numbers = #tpu.dot_dimension_numbers<[1], [0], [0], [1], [0, 0, 1, 1], [], []>} : vector<16x512xbf16>, vector<512x256xbf16>, vector<16x256xf32> -> vector<16x256xf32>
    %c0_3 = arith.constant 0 : index
    %c0_4 = arith.constant 0 : index
    %3 = vector.load %arg2[%c0_3, %c0_4] : memref<16x512xbf16, #tpu.memory_space<vmem>>, vector<16x512xbf16>
    %c0_5 = arith.constant 0 : index
    %c0_6 = arith.constant 0 : index
    %4 = vector.load %arg5[%c0_5, %c0_6] : memref<512x256xbf16, #tpu.memory_space<vmem>>, vector<512x256xbf16>
    %cst_7 = arith.constant dense<0.000000e+00> : vector<16x256xf32>
    %5 = tpu.matmul %3, %4, %cst_7 {dimension_numbers = #tpu.dot_dimension_numbers<[1], [0], [0], [1], [0, 0, 1, 1], [], []>} : vector<16x512xbf16>, vector<512x256xbf16>, vector<16x256xf32> -> vector<16x256xf32>
    %6 = arith.addf %2, %5 : vector<16x256xf32>
    %c0_8 = arith.constant 0 : index
    %c0_9 = arith.constant 0 : index
    %7 = vector.load %arg3[%c0_8, %c0_9] : memref<16x8xf32, #tpu.memory_space<vmem>>, vector<16x8xf32>
    %8 = vector.extract_strided_slice %7 {offsets = [0, 0], sizes = [16, 1], strides = [1, 1]} : vector<16x8xf32> to vector<16x1xf32>
    %c0_10 = arith.constant 0 : index
    %c0_11 = arith.constant 0 : index
    %9 = vector.load %arg6[%c0_10, %c0_11] : memref<2x256xf32, #tpu.memory_space<vmem>>, vector<2x256xf32>
    %10 = vector.extract_strided_slice %7 {offsets = [0, 1], sizes = [16, 1], strides = [1, 1]} : vector<16x8xf32> to vector<16x1xf32>
    %11 = vector.extract_strided_slice %9 {offsets = [0, 0], sizes = [1, 256], strides = [1, 1]} : vector<2x256xf32> to vector<1x256xf32>
    %12 = vector.broadcast %10 : vector<16x1xf32> to vector<16x256xf32>
    %13 = vector.broadcast %11 : vector<1x256xf32> to vector<16x256xf32>
    %14 = arith.mulf %12, %13 : vector<16x256xf32>
    %15 = vector.extract_strided_slice %7 {offsets = [0, 2], sizes = [16, 1], strides = [1, 1]} : vector<16x8xf32> to vector<16x1xf32>
    %16 = vector.extract_strided_slice %9 {offsets = [1, 0], sizes = [1, 256], strides = [1, 1]} : vector<2x256xf32> to vector<1x256xf32>
    %17 = vector.broadcast %15 : vector<16x1xf32> to vector<16x256xf32>
    %18 = vector.broadcast %16 : vector<1x256xf32> to vector<16x256xf32>
    %19 = arith.mulf %17, %18 : vector<16x256xf32>
    %20 = arith.addf %14, %19 : vector<16x256xf32>
    %21 = vector.broadcast %8 : vector<16x1xf32> to vector<16x256xf32>
    %22 = arith.mulf %21, %6 : vector<16x256xf32>
    %23 = arith.addf %22, %20 : vector<16x256xf32>
    %c0_12 = arith.constant 0 : index
    %c0_13 = arith.constant 0 : index
    %24 = vector.load %arg7[%c0_12, %c0_13] : memref<1x256xf32, #tpu.memory_space<vmem>>, vector<1x256xf32>
    %25 = vector.broadcast %24 : vector<1x256xf32> to vector<16x256xf32>
    %26 = arith.addf %23, %25 : vector<16x256xf32>
    %cst_14 = arith.constant 0.000000e+00 : f32
    %27 = vector.broadcast %cst_14 : f32 to vector<16x256xf32>
    %28 = arith.maximumf %26, %27 : vector<16x256xf32>
    %29 = arith.truncf %28 : vector<16x256xf32> to vector<16x256xbf16>
    %c0_15 = arith.constant 0 : index
    %c0_16 = arith.constant 0 : index
    %30 = vector.load %arg8[%c0_15, %c0_16] : memref<256x128xbf16, #tpu.memory_space<vmem>>, vector<256x128xbf16>
    %cst_17 = arith.constant dense<0.000000e+00> : vector<16x128xf32>
    %31 = tpu.matmul %29, %30, %cst_17 {dimension_numbers = #tpu.dot_dimension_numbers<[1], [0], [0], [1], [0, 0, 1, 1], [], []>} : vector<16x256xbf16>, vector<256x128xbf16>, vector<16x128xf32> -> vector<16x128xf32>
    %c0_18 = arith.constant 0 : index
    %c0_19 = arith.constant 0 : index
    %32 = vector.load %arg9[%c0_18, %c0_19] : memref<1x128xf32, #tpu.memory_space<vmem>>, vector<1x128xf32>
    %33 = vector.broadcast %32 : vector<1x128xf32> to vector<16x128xf32>
    %34 = arith.addf %31, %33 : vector<16x128xf32>
    %35 = arith.mulf %34, %34 : vector<16x128xf32>
    %cst_20 = arith.constant dense<0.000000e+00> : vector<16xf32>
    %36 = vector.multi_reduction <add>, %35, %cst_20 [1] : vector<16x128xf32> to vector<16xf32>
    %37 = vector.shape_cast %36 : vector<16xf32> to vector<16x1xf32>
    %cst_21 = arith.constant 1.000000e-24 : f32
    %38 = vector.broadcast %cst_21 : f32 to vector<16x1xf32>
    %39 = arith.maximumf %37, %38 : vector<16x1xf32>
    %40 = math.rsqrt %39 : vector<16x1xf32>
    %41 = vector.broadcast %40 : vector<16x1xf32> to vector<16x128xf32>
    %42 = arith.mulf %34, %41 : vector<16x128xf32>
    %c0_22 = arith.constant 0 : index
    %c0_23 = arith.constant 0 : index
    %43 = vector.load %arg10[%c0_22, %c0_23] : memref<16x128xf32, #tpu.memory_space<vmem>>, vector<16x128xf32>
    tpu.vector_store %arg10[%c0_22, %c0_23], %42 {strides = array<i32>} : memref<16x128xf32, #tpu.memory_space<vmem>>, vector<16x128xf32>,
    return
  }
  func.func @transform_0(%arg0: i32) -> (i32, i32) {
    %c0_i32 = arith.constant 0 : i32
    %c0_i32_0 = arith.constant 0 : i32
    return %arg0, %c0_i32 : i32, i32
  }
  func.func @transform_1(%arg0: i32) -> (i32, i32) {
    %c0_i32 = arith.constant 0 : i32
    %c0_i32_0 = arith.constant 0 : i32
    return %arg0, %c0_i32 : i32, i32
  }
  func.func @transform_2(%arg0: i32) -> (i32, i32) {
    %c0_i32 = arith.constant 0 : i32
    %c0_i32_0 = arith.constant 0 : i32
    return %arg0, %c0_i32 : i32, i32
  }
  func.func @transform_3(%arg0: i32) -> (i32, i32) {
    %c0_i32 = arith.constant 0 : i32
    %c0_i32_0 = arith.constant 0 : i32
    %c0_i32_1 = arith.constant 0 : i32
    return %c0_i32, %c0_i32_0 : i32, i32
  }
  func.func @transform_4(%arg0: i32) -> (i32, i32) {
    %c0_i32 = arith.constant 0 : i32
    %c0_i32_0 = arith.constant 0 : i32
    %c0_i32_1 = arith.constant 0 : i32
    return %c0_i32, %c0_i32_0 : i32, i32
  }
  func.func @transform_5(%arg0: i32) -> (i32, i32) {
    %c0_i32 = arith.constant 0 : i32
    %c0_i32_0 = arith.constant 0 : i32
    %c0_i32_1 = arith.constant 0 : i32
    return %c0_i32, %c0_i32_0 : i32, i32
  }
  func.func @transform_6(%arg0: i32) -> (i32, i32) {
    %c0_i32 = arith.constant 0 : i32
    %c0_i32_0 = arith.constant 0 : i32
    %c0_i32_1 = arith.constant 0 : i32
    return %c0_i32, %c0_i32_0 : i32, i32
  }
  func.func @transform_7(%arg0: i32) -> (i32, i32) {
    %c0_i32 = arith.constant 0 : i32
    %c0_i32_0 = arith.constant 0 : i32
    %c0_i32_1 = arith.constant 0 : i32
    return %c0_i32, %c0_i32_0 : i32, i32
  }
  func.func @transform_8(%arg0: i32) -> (i32, i32) {
    %c0_i32 = arith.constant 0 : i32
    %c0_i32_0 = arith.constant 0 : i32
    %c0_i32_1 = arith.constant 0 : i32
    return %c0_i32, %c0_i32_0 : i32, i32
  }
  func.func @transform_9(%arg0: i32) -> (i32, i32) {
    %c0_i32 = arith.constant 0 : i32
    %c0_i32_0 = arith.constant 0 : i32
    return %arg0, %c0_i32 : i32, i32
  }
}

</mosaic_0001>

<llo_original>
// kernel: gaze_dir_forward.1
$region0: #{gaze_dir_forward.1}
  #allocation0 [shape = 'u32[]', space=smem, size = 0x4, offset = 0x4, fixed_abs, tag = 'smem constant byte address 0x4 - core index']
  #allocation1 [shape = 'u32[72,128]{1,0:T(1,128)}', space=vmem, size = 0x9000, scoped, tag = 'internal scratch']
  %s0 = inlined_call_operand.vmem [shape: bf16[16,512], index: 0, kind: input, shape index: {}]
  %s1 = inlined_call_operand.vmem [shape: bf16[16,512], index: 1, kind: input, shape index: {}]
  %s2 = inlined_call_operand.vmem [shape: f32[16,8], index: 2, kind: input, shape index: {}]
  %s3 = inlined_call_operand.vmem [shape: bf16[512,256], index: 3, kind: input, shape index: {}]
  %s4 = inlined_call_operand.vmem [shape: bf16[512,256], index: 4, kind: input, shape index: {}]
  %s5 = inlined_call_operand.vmem [shape: f32[2,256], index: 5, kind: input, shape index: {}]
  %s6 = inlined_call_operand.vmem [shape: f32[1,256], index: 6, kind: input, shape index: {}]
  %s7 = inlined_call_operand.vmem [shape: bf16[256,128], index: 7, kind: input, shape index: {}]
  %s8 = inlined_call_operand.vmem [shape: f32[1,128], index: 8, kind: input, shape index: {}]
  %s9 = inlined_call_operand.vmem [shape: f32[16,128], index: 9, kind: output, shape index: {}]
  %s10 = sld [smem:[#allocation0]]
  $region46: #{gaze_dir_forward.1} parent=0
    _
  %s12 = ssub.s32 1, %s10
  %s13 = scalar_select 0, %s12, %s10
  // Predicated region
  $region2: #{gaze_dir_forward.1} parent=0 // pred_check
    _
  $region3: #{gaze_dir_forward.1} parent=0 // pred_check_branch
    %15 = sbr.rel (0) target = $region5
  $region4: #{gaze_dir_forward.1} parent=0 // pred_region
    _
  $region5: #{gaze_dir_forward.1} parent=0 // pred_fallthru
    _
  // Predicated region
  $region6: #{gaze_dir_forward.1} parent=0 // pred_check
    _
  $region7: #{gaze_dir_forward.1} parent=0 // pred_check_branch
    %17 = sbr.rel (0) target = $region9
  $region8: #{gaze_dir_forward.1} parent=0 // pred_region
    _
  $region9: #{gaze_dir_forward.1} parent=0 // pred_fallthru
    _
  // Predicated region
  $region10: #{gaze_dir_forward.1} parent=0 // pred_check
    _
  $region11: #{gaze_dir_forward.1} parent=0 // pred_check_branch
    %19 = sbr.rel (0) target = $region13
  $region12: #{gaze_dir_forward.1} parent=0 // pred_region
    _
  $region13: #{gaze_dir_forward.1} parent=0 // pred_fallthru
    _
  // Predicated region
  $region14: #{gaze_dir_forward.1} parent=0 // pred_check
    _
  $region15: #{gaze_dir_forward.1} parent=0 // pred_check_branch
    %21 = sbr.rel (0) target = $region17
  $region16: #{gaze_dir_forward.1} parent=0 // pred_region
    _
  $region17: #{gaze_dir_forward.1} parent=0 // pred_fallthru
    _
  // Predicated region
  $region18: #{gaze_dir_forward.1} parent=0 // pred_check
    _
  $region19: #{gaze_dir_forward.1} parent=0 // pred_check_branch
    %23 = sbr.rel (0) target = $region21
  $region20: #{gaze_dir_forward.1} parent=0 // pred_region
    _
  $region21: #{gaze_dir_forward.1} parent=0 // pred_fallthru
    _
  // Predicated region
  $region22: #{gaze_dir_forward.1} parent=0 // pred_check
    _
  $region23: #{gaze_dir_forward.1} parent=0 // pred_check_branch
    %25 = sbr.rel (0) target = $region25
  $region24: #{gaze_dir_forward.1} parent=0 // pred_region
    _
  $region25: #{gaze_dir_forward.1} parent=0 // pred_fallthru
    _
  // Predicated region
  $region26: #{gaze_dir_forward.1} parent=0 // pred_check
    _
  $region27: #{gaze_dir_forward.1} parent=0 // pred_check_branch
    %27 = sbr.rel (0) target = $region29
  $region28: #{gaze_dir_forward.1} parent=0 // pred_region
    _
  $region29: #{gaze_dir_forward.1} parent=0 // pred_fallthru
    _
  // Predicated region
  $region30: #{gaze_dir_forward.1} parent=0 // pred_check
    _
  $region31: #{gaze_dir_forward.1} parent=0 // pred_check_branch
    %29 = sbr.rel (0) target = $region33
  $region32: #{gaze_dir_forward.1} parent=0 // pred_region
    _
  $region33: #{gaze_dir_forward.1} parent=0 // pred_fallthru
    _
  // Predicated region
  $region34: #{gaze_dir_forward.1} parent=0 // pred_check
    _
  $region35: #{gaze_dir_forward.1} parent=0 // pred_check_branch
    %31 = sbr.rel (0) target = $region37
  $region36: #{gaze_dir_forward.1} parent=0 // pred_region
    _
  $region37: #{gaze_dir_forward.1} parent=0 // pred_fallthru
    _
  %v32 = vld [vmem:[%s0] sm:$0xff]
  %v33 = vld [vmem:[%s0 + $0x8] sm:$0xff]
  %v34 = vld [vmem:[%s0 + $0x10] sm:$0xff]
  %v35 = vld [vmem:[%s0 + $0x18] sm:$0xff]
  %v36 = vld [vmem:[%s3] sm:$0xff]
  %v37 = vld [vmem:[%s3 + $0x8] sm:$0xff]
  %v38 = vld [vmem:[%s3 + $0x10] sm:$0xff]
  %v39 = vld [vmem:[%s3 + $0x18] sm:$0xff]
  %v40 = vld [vmem:[%s3 + $0x20] sm:$0xff]
  %v41 = vld [vmem:[%s3 + $0x28] sm:$0xff]
  %v42 = vld [vmem:[%s3 + $0x30] sm:$0xff]
  %v43 = vld [vmem:[%s3 + $0x38] sm:$0xff]
  %v44 = vld [vmem:[%s3 + $0x40] sm:$0xff]
  %v45 = vld [vmem:[%s3 + $0x48] sm:$0xff]
  %v46 = vld [vmem:[%s3 + $0x50] sm:$0xff]
  %v47 = vld [vmem:[%s3 + $0x58] sm:$0xff]
  %v48 = vld [vmem:[%s3 + $0x60] sm:$0xff]
  %v49 = vld [vmem:[%s3 + $0x68] sm:$0xff]
  %v50 = vld [vmem:[%s3 + $0x70] sm:$0xff]
  %v51 = vld [vmem:[%s3 + $0x78] sm:$0xff]
  %v52 = vld [vmem:[%s3 + $0x80] sm:$0xff]
  %v53 = vld [vmem:[%s3 + $0x88] sm:$0xff]
  %v54 = vld [vmem:[%s3 + $0x90] sm:$0xff]
  %v55 = vld [vmem:[%s3 + $0x98] sm:$0xff]
  %v56 = vld [vmem:[%s3 + $0xa0] sm:$0xff]
  %v57 = vld [vmem:[%s3 + $0xa8] sm:$0xff]
  %v58 = vld [vmem:[%s3 + $0xb0] sm:$0xff]
  %v59 = vld [vmem:[%s3 + $0xb8] sm:$0xff]
  %v60 = vld [vmem:[%s3 + $0xc0] sm:$0xff]
  %v61 = vld [vmem:[%s3 + $0xc8] sm:$0xff]
  %v62 = vld [vmem:[%s3 + $0xd0] sm:$0xff]
  %v63 = vld [vmem:[%s3 + $0xd8] sm:$0xff]
  %v64 = vld [vmem:[%s3 + $0xe0] sm:$0xff]
  %v65 = vld [vmem:[%s3 + $0xe8] sm:$0xff]
  %v66 = vld [vmem:[%s3 + $0xf0] sm:$0xff]
  %v67 = vld [vmem:[%s3 + $0xf8] sm:$0xff]
  %v68 = vld [vmem:[%s3 + $0x100] sm:$0xff]
  %v69 = vld [vmem:[%s3 + $0x108] sm:$0xff]
  %v70 = vld [vmem:[%s3 + $0x110] sm:$0xff]
  %v71 = vld [vmem:[%s3 + $0x118] sm:$0xff]
  %v72 = vld [vmem:[%s3 + $0x120] sm:$0xff]
  %v73 = vld [vmem:[%s3 + $0x128] sm:$0xff]
  %v74 = vld [vmem:[%s3 + $0x130] sm:$0xff]
  %v75 = vld [vmem:[%s3 + $0x138] sm:$0xff]
  %v76 = vld [vmem:[%s3 + $0x140] sm:$0xff]
  %v77 = vld [vmem:[%s3 + $0x148] sm:$0xff]
  %v78 = vld [vmem:[%s3 + $0x150] sm:$0xff]
  %v79 = vld [vmem:[%s3 + $0x158] sm:$0xff]
  %v80 = vld [vmem:[%s3 + $0x160] sm:$0xff]
  %v81 = vld [vmem:[%s3 + $0x168] sm:$0xff]
  %v82 = vld [vmem:[%s3 + $0x170] sm:$0xff]
  %v83 = vld [vmem:[%s3 + $0x178] sm:$0xff]
  %v84 = vld [vmem:[%s3 + $0x180] sm:$0xff]
  %v85 = vld [vmem:[%s3 + $0x188] sm:$0xff]
  %v86 = vld [vmem:[%s3 + $0x190] sm:$0xff]
  %v87 = vld [vmem:[%s3 + $0x198] sm:$0xff]
  %v88 = vld [vmem:[%s3 + $0x1a0] sm:$0xff]
  %v89 = vld [vmem:[%s3 + $0x1a8] sm:$0xff]
  %v90 = vld [vmem:[%s3 + $0x1b0] sm:$0xff]
  %v91 = vld [vmem:[%s3 + $0x1b8] sm:$0xff]
  %v92 = vld [vmem:[%s3 + $0x1c0] sm:$0xff]
  %v93 = vld [vmem:[%s3 + $0x1c8] sm:$0xff]
  %v94 = vld [vmem:[%s3 + $0x1d0] sm:$0xff]
  %v95 = vld [vmem:[%s3 + $0x1d8] sm:$0xff]
  %v96 = vld [vmem:[%s3 + $0x1e0] sm:$0xff]
  %v97 = vld [vmem:[%s3 + $0x1e8] sm:$0xff]
  %v98 = vld [vmem:[%s3 + $0x1f0] sm:$0xff]
  %v99 = vld [vmem:[%s3 + $0x1f8] sm:$0xff]
  %v100 = vld [vmem:[%s1] sm:$0xff]
  %v101 = vld [vmem:[%s1 + $0x8] sm:$0xff]
  %v102 = vld [vmem:[%s1 + $0x10] sm:$0xff]
  %v103 = vld [vmem:[%s1 + $0x18] sm:$0xff]
  %v104 = vld [vmem:[%s4] sm:$0xff]
  %v105 = vld [vmem:[%s4 + $0x8] sm:$0xff]
  %v106 = vld [vmem:[%s4 + $0x10] sm:$0xff]
  %v107 = vld [vmem:[%s4 + $0x18] sm:$0xff]
  %v108 = vld [vmem:[%s4 + $0x20] sm:$0xff]
  %v109 = vld [vmem:[%s4 + $0x28] sm:$0xff]
  %v110 = vld [vmem:[%s4 + $0x30] sm:$0xff]
  %v111 = vld [vmem:[%s4 + $0x38] sm:$0xff]
  %v112 = vld [vmem:[%s4 + $0x40] sm:$0xff]
  %v113 = vld [vmem:[%s4 + $0x48] sm:$0xff]
  %v114 = vld [vmem:[%s4 + $0x50] sm:$0xff]
  %v115 = vld [vmem:[%s4 + $0x58] sm:$0xff]
  %v116 = vld [vmem:[%s4 + $0x60] sm:$0xff]
  %v117 = vld [vmem:[%s4 + $0x68] sm:$0xff]
  %v118 = vld [vmem:[%s4 + $0x70] sm:$0xff]
  %v119 = vld [vmem:[%s4 + $0x78] sm:$0xff]
  %v120 = vld [vmem:[%s4 + $0x80] sm:$0xff]
  %v121 = vld [vmem:[%s4 + $0x88] sm:$0xff]
  %v122 = vld [vmem:[%s4 + $0x90] sm:$0xff]
  %v123 = vld [vmem:[%s4 + $0x98] sm:$0xff]
  %v124 = vld [vmem:[%s4 + $0xa0] sm:$0xff]
  %v125 = vld [vmem:[%s4 + $0xa8] sm:$0xff]
  %v126 = vld [vmem:[%s4 + $0xb0] sm:$0xff]
  %v127 = vld [vmem:[%s4 + $0xb8] sm:$0xff]
  %v128 = vld [vmem:[%s4 + $0xc0] sm:$0xff]
  %v129 = vld [vmem:[%s4 + $0xc8] sm:$0xff]
  %v130 = vld [vmem:[%s4 + $0xd0] sm:$0xff]
  %v131 = vld [vmem:[%s4 + $0xd8] sm:$0xff]
  %v132 = vld [vmem:[%s4 + $0xe0] sm:$0xff]
  %v133 = vld [vmem:[%s4 + $0xe8] sm:$0xff]
  %v134 = vld [vmem:[%s4 + $0xf0] sm:$0xff]
  %v135 = vld [vmem:[%s4 + $0xf8] sm:$0xff]
  %v136 = vld [vmem:[%s4 + $0x100] sm:$0xff]
  %v137 = vld [vmem:[%s4 + $0x108] sm:$0xff]
  %v138 = vld [vmem:[%s4 + $0x110] sm:$0xff]
  %v139 = vld [vmem:[%s4 + $0x118] sm:$0xff]
  %v140 = vld [vmem:[%s4 + $0x120] sm:$0xff]
  %v141 = vld [vmem:[%s4 + $0x128] sm:$0xff]
  %v142 = vld [vmem:[%s4 + $0x130] sm:$0xff]
  %v143 = vld [vmem:[%s4 + $0x138] sm:$0xff]
  %v144 = vld [vmem:[%s4 + $0x140] sm:$0xff]
  %v145 = vld [vmem:[%s4 + $0x148] sm:$0xff]
  %v146 = vld [vmem:[%s4 + $0x150] sm:$0xff]
  %v147 = vld [vmem:[%s4 + $0x158] sm:$0xff]
  %v148 = vld [vmem:[%s4 + $0x160] sm:$0xff]
  %v149 = vld [vmem:[%s4 + $0x168] sm:$0xff]
  %v150 = vld [vmem:[%s4 + $0x170] sm:$0xff]
  %v151 = vld [vmem:[%s4 + $0x178] sm:$0xff]
  %v152 = vld [vmem:[%s4 + $0x180] sm:$0xff]
  %v153 = vld [vmem:[%s4 + $0x188] sm:$0xff]
  %v154 = vld [vmem:[%s4 + $0x190] sm:$0xff]
  %v155 = vld [vmem:[%s4 + $0x198] sm:$0xff]
  %v156 = vld [vmem:[%s4 + $0x1a0] sm:$0xff]
  %v157 = vld [vmem:[%s4 + $0x1a8] sm:$0xff]
  %v158 = vld [vmem:[%s4 + $0x1b0] sm:$0xff]
  %v159 = vld [vmem:[%s4 + $0x1b8] sm:$0xff]
  %v160 = vld [vmem:[%s4 + $0x1c0] sm:$0xff]
  %v161 = vld [vmem:[%s4 + $0x1c8] sm:$0xff]
  %v162 = vld [vmem:[%s4 + $0x1d0] sm:$0xff]
  %v163 = vld [vmem:[%s4 + $0x1d8] sm:$0xff]
  %v164 = vld [vmem:[%s4 + $0x1e0] sm:$0xff]
  %v165 = vld [vmem:[%s4 + $0x1e8] sm:$0xff]
  %v166 = vld [vmem:[%s4 + $0x1f0] sm:$0xff]
  %v167 = vld [vmem:[%s4 + $0x1f8] sm:$0xff]
  %v172 = vunpack.c.l.b16 %v100
  %v173 = vunpack.c.h.b16 %v100
  %v174 = vunpack.c.l.b16 %v101
  %v175 = vunpack.c.h.b16 %v101
  %v176 = vunpack.c.l.b16 %v102
  %v177 = vunpack.c.h.b16 %v102
  %v178 = vunpack.c.l.b16 %v103
  %v179 = vunpack.c.h.b16 %v103
  %v180 = vpack.c.b16 %v176, %v172
  %v181 = vpack.c.b16 %v177, %v173
  %v182 = vpack.c.b16 %v178, %v174
  %v183 = vpack.c.b16 %v179, %v175
  %v252 = vunpack.c.l.b16 %v104
  %v253 = vunpack.c.h.b16 %v104
  %v254 = vunpack.c.l.b16 %v105
  %v255 = vunpack.c.h.b16 %v105
  %v256 = vunpack.c.l.b16 %v106
  %v257 = vunpack.c.h.b16 %v106
  %v258 = vunpack.c.l.b16 %v107
  %v259 = vunpack.c.h.b16 %v107
  %v260 = vunpack.c.l.b16 %v108
  %v261 = vunpack.c.h.b16 %v108
  %v262 = vunpack.c.l.b16 %v109
  %v263 = vunpack.c.h.b16 %v109
  %v264 = vunpack.c.l.b16 %v110
  %v265 = vunpack.c.h.b16 %v110
  %v266 = vunpack.c.l.b16 %v111
  %v267 = vunpack.c.h.b16 %v111
  %v268 = vunpack.c.l.b16 %v112
  %v269 = vunpack.c.h.b16 %v112
  %v270 = vunpack.c.l.b16 %v113
  %v271 = vunpack.c.h.b16 %v113
  %v272 = vunpack.c.l.b16 %v114
  %v273 = vunpack.c.h.b16 %v114
  %v274 = vunpack.c.l.b16 %v115
  %v275 = vunpack.c.h.b16 %v115
  %v276 = vunpack.c.l.b16 %v116
  %v277 = vunpack.c.h.b16 %v116
  %v278 = vunpack.c.l.b16 %v117
  %v279 = vunpack.c.h.b16 %v117
  %v280 = vunpack.c.l.b16 %v118
  %v281 = vunpack.c.h.b16 %v118
  %v282 = vunpack.c.l.b16 %v119
  %v283 = vunpack.c.h.b16 %v119
  %v284 = vunpack.c.l.b16 %v120
  %v285 = vunpack.c.h.b16 %v120
  %v286 = vunpack.c.l.b16 %v121
  %v287 = vunpack.c.h.b16 %v121
  %v288 = vunpack.c.l.b16 %v122
  %v289 = vunpack.c.h.b16 %v122
  %v290 = vunpack.c.l.b16 %v123
  %v291 = vunpack.c.h.b16 %v123
  %v292 = vunpack.c.l.b16 %v124
  %v293 = vunpack.c.h.b16 %v124
  %v294 = vunpack.c.l.b16 %v125
  %v295 = vunpack.c.h.b16 %v125
  %v296 = vunpack.c.l.b16 %v126
  %v297 = vunpack.c.h.b16 %v126
  %v298 = vunpack.c.l.b16 %v127
  %v299 = vunpack.c.h.b16 %v127
  %v300 = vunpack.c.l.b16 %v128
  %v301 = vunpack.c.h.b16 %v128
  %v302 = vunpack.c.l.b16 %v129
  %v303 = vunpack.c.h.b16 %v129
  %v304 = vunpack.c.l.b16 %v130
  %v305 = vunpack.c.h.b16 %v130
  %v306 = vunpack.c.l.b16 %v131
  %v307 = vunpack.c.h.b16 %v131
  %v308 = vunpack.c.l.b16 %v132
  %v309 = vunpack.c.h.b16 %v132
  %v310 = vunpack.c.l.b16 %v133
  %v311 = vunpack.c.h.b16 %v133
  %v312 = vunpack.c.l.b16 %v134
  %v313 = vunpack.c.h.b16 %v134
  %v314 = vunpack.c.l.b16 %v135
  %v315 = vunpack.c.h.b16 %v135
  %v316 = vunpack.c.l.b16 %v136
  %v317 = vunpack.c.h.b16 %v136
  %v318 = vunpack.c.l.b16 %v137
  %v319 = vunpack.c.h.b16 %v137
  %v320 = vunpack.c.l.b16 %v138
  %v321 = vunpack.c.h.b16 %v138
  %v322 = vunpack.c.l.b16 %v139
  %v323 = vunpack.c.h.b16 %v139
  %v324 = vunpack.c.l.b16 %v140
  %v325 = vunpack.c.h.b16 %v140
  %v326 = vunpack.c.l.b16 %v141
  %v327 = vunpack.c.h.b16 %v141
  %v328 = vunpack.c.l.b16 %v142
  %v329 = vunpack.c.h.b16 %v142
  %v330 = vunpack.c.l.b16 %v143
  %v331 = vunpack.c.h.b16 %v143
  %v332 = vunpack.c.l.b16 %v144
  %v333 = vunpack.c.h.b16 %v144
  %v334 = vunpack.c.l.b16 %v145
  %v335 = vunpack.c.h.b16 %v145
  %v336 = vunpack.c.l.b16 %v146
  %v337 = vunpack.c.h.b16 %v146
  %v338 = vunpack.c.l.b16 %v147
  %v339 = vunpack.c.h.b16 %v147
  %v340 = vunpack.c.l.b16 %v148
  %v341 = vunpack.c.h.b16 %v148
  %v342 = vunpack.c.l.b16 %v149
  %v343 = vunpack.c.h.b16 %v149
  %v344 = vunpack.c.l.b16 %v150
  %v345 = vunpack.c.h.b16 %v150
  %v346 = vunpack.c.l.b16 %v151
  %v347 = vunpack.c.h.b16 %v151
  %v348 = vunpack.c.l.b16 %v152
  %v349 = vunpack.c.h.b16 %v152
  %v350 = vunpack.c.l.b16 %v153
  %v351 = vunpack.c.h.b16 %v153
  %v352 = vunpack.c.l.b16 %v154
  %v353 = vunpack.c.h.b16 %v154
  %v354 = vunpack.c.l.b16 %v155
  %v355 = vunpack.c.h.b16 %v155
  %v356 = vunpack.c.l.b16 %v156
  %v357 = vunpack.c.h.b16 %v156
  %v358 = vunpack.c.l.b16 %v157
  %v359 = vunpack.c.h.b16 %v157
  %v360 = vunpack.c.l.b16 %v158
  %v361 = vunpack.c.h.b16 %v158
  %v362 = vunpack.c.l.b16 %v159
  %v363 = vunpack.c.h.b16 %v159
  %v364 = vunpack.c.l.b16 %v160
  %v365 = vunpack.c.h.b16 %v160
  %v366 = vunpack.c.l.b16 %v161
  %v367 = vunpack.c.h.b16 %v161
  %v368 = vunpack.c.l.b16 %v162
  %v369 = vunpack.c.h.b16 %v162
  %v370 = vunpack.c.l.b16 %v163
  %v371 = vunpack.c.h.b16 %v163
  %v372 = vunpack.c.l.b16 %v164
  %v373 = vunpack.c.h.b16 %v164
  %v374 = vunpack.c.l.b16 %v165
  %v375 = vunpack.c.h.b16 %v165
  %v376 = vunpack.c.l.b16 %v166
  %v377 = vunpack.c.h.b16 %v166
  %v378 = vunpack.c.l.b16 %v167
  %v379 = vunpack.c.h.b16 %v167
  %v380 = vpack.c.b16 %v254, %v252
  %v381 = vpack.c.b16 %v255, %v253
  %v382 = vpack.c.b16 %v258, %v256
  %v383 = vpack.c.b16 %v259, %v257
  %v384 = vpack.c.b16 %v262, %v260
  %v385 = vpack.c.b16 %v263, %v261
  %v386 = vpack.c.b16 %v266, %v264
  %v387 = vpack.c.b16 %v267, %v265
  %v388 = vpack.c.b16 %v270, %v268
  %v389 = vpack.c.b16 %v271, %v269
  %v390 = vpack.c.b16 %v274, %v272
  %v391 = vpack.c.b16 %v275, %v273
  %v392 = vpack.c.b16 %v278, %v276
  %v393 = vpack.c.b16 %v279, %v277
  %v394 = vpack.c.b16 %v282, %v280
  %v395 = vpack.c.b16 %v283, %v281
  %v396 = vpack.c.b16 %v286, %v284
  %v397 = vpack.c.b16 %v287, %v285
  %v398 = vpack.c.b16 %v290, %v288
  %v399 = vpack.c.b16 %v291, %v289
  %v400 = vpack.c.b16 %v294, %v292
  %v401 = vpack.c.b16 %v295, %v293
  %v402 = vpack.c.b16 %v298, %v296
  %v403 = vpack.c.b16 %v299, %v297
  %v404 = vpack.c.b16 %v302, %v300
  %v405 = vpack.c.b16 %v303, %v301
  %v406 = vpack.c.b16 %v306, %v304
  %v407 = vpack.c.b16 %v307, %v305
  %v408 = vpack.c.b16 %v310, %v308
  %v409 = vpack.c.b16 %v311, %v309
  %v410 = vpack.c.b16 %v314, %v312
  %v411 = vpack.c.b16 %v315, %v313
  %v412 = vpack.c.b16 %v318, %v316
  %v413 = vpack.c.b16 %v319, %v317
  %v414 = vpack.c.b16 %v322, %v320
  %v415 = vpack.c.b16 %v323, %v321
  %v416 = vpack.c.b16 %v326, %v324
  %v417 = vpack.c.b16 %v327, %v325
  %v418 = vpack.c.b16 %v330, %v328
  %v419 = vpack.c.b16 %v331, %v329
  %v420 = vpack.c.b16 %v334, %v332
  %v421 = vpack.c.b16 %v335, %v333
  %v422 = vpack.c.b16 %v338, %v336
  %v423 = vpack.c.b16 %v339, %v337
  %v424 = vpack.c.b16 %v342, %v340
  %v425 = vpack.c.b16 %v343, %v341
  %v426 = vpack.c.b16 %v346, %v344
  %v427 = vpack.c.b16 %v347, %v345
  %v428 = vpack.c.b16 %v350, %v348
  %v429 = vpack.c.b16 %v351, %v349
  %v430 = vpack.c.b16 %v354, %v352
  %v431 = vpack.c.b16 %v355, %v353
  %v432 = vpack.c.b16 %v358, %v356
  %v433 = vpack.c.b16 %v359, %v357
  %v434 = vpack.c.b16 %v362, %v360
  %v435 = vpack.c.b16 %v363, %v361
  %v436 = vpack.c.b16 %v366, %v364
  %v437 = vpack.c.b16 %v367, %v365
  %v438 = vpack.c.b16 %v370, %v368
  %v439 = vpack.c.b16 %v371, %v369
  %v440 = vpack.c.b16 %v374, %v372
  %v441 = vpack.c.b16 %v375, %v373
  %v442 = vpack.c.b16 %v378, %v376
  %v443 = vpack.c.b16 %v379, %v377
  %508 = vmatpush.bf16.msra.mxu0 %v394
  %509 = vmatpush.bf16.msra.mxu0 %v392
  %510 = vmatpush.bf16.msra.mxu0 %v390
  %511 = vmatpush.bf16.msra.mxu0 %v388
  %512 = vmatpush.bf16.msra.mxu0 %v386
  %513 = vmatpush.bf16.msra.mxu0 %v384
  %514 = vmatpush.bf16.msra.mxu0 %v382
  %515 = vmatpush.bf16.msra.mxu0 %v380
  %516 = vmatmul.bf16.gmra.mxu0 %v180
  %v517 = vpop.f32.mrf.mxu0
  %v518 = vadd.f32 0.0, %v517
  %v519 = vpop.f32.mrf.mxu0
  %v520 = vadd.f32 0.0, %v519
  %521 = vdwg.mxu0
  %522 = vmatpush.bf16.msra.mxu0 %v410
  %523 = vmatpush.bf16.msra.mxu0 %v408
  %524 = vmatpush.bf16.msra.mxu0 %v406
  %525 = vmatpush.bf16.msra.mxu0 %v404
  %526 = vmatpush.bf16.msra.mxu0 %v402
  %527 = vmatpush.bf16.msra.mxu0 %v400
  %528 = vmatpush.bf16.msra.mxu0 %v398
  %529 = vmatpush.bf16.msra.mxu0 %v396
  %530 = vmatmul.bf16.gmra.mxu0 %v181
  %v531 = vpop.f32.mrf.mxu0
  %v532 = vadd.f32 %v518, %v531
  %v533 = vpop.f32.mrf.mxu0
  %v534 = vadd.f32 %v520, %v533
  %535 = vdwg.mxu0
  %536 = vmatpush.bf16.msra.mxu0 %v426
  %537 = vmatpush.bf16.msra.mxu0 %v424
  %538 = vmatpush.bf16.msra.mxu0 %v422
  %539 = vmatpush.bf16.msra.mxu0 %v420
  %540 = vmatpush.bf16.msra.mxu0 %v418
  %541 = vmatpush.bf16.msra.mxu0 %v416
  %542 = vmatpush.bf16.msra.mxu0 %v414
  %543 = vmatpush.bf16.msra.mxu0 %v412
  %544 = vmatmul.bf16.gmra.mxu0 %v182
  %v545 = vpop.f32.mrf.mxu0
  %v546 = vadd.f32 %v532, %v545
  %v547 = vpop.f32.mrf.mxu0
  %v548 = vadd.f32 %v534, %v547
  %549 = vdwg.mxu0
  %550 = vmatpush.bf16.msra.mxu0 %v442
  %551 = vmatpush.bf16.msra.mxu0 %v440
  %552 = vmatpush.bf16.msra.mxu0 %v438
  %553 = vmatpush.bf16.msra.mxu0 %v436
  %554 = vmatpush.bf16.msra.mxu0 %v434
  %555 = vmatpush.bf16.msra.mxu0 %v432
  %556 = vmatpush.bf16.msra.mxu0 %v430
  %557 = vmatpush.bf16.msra.mxu0 %v428
  %558 = vmatmul.bf16.gmra.mxu0 %v183
  %v559 = vpop.f32.mrf.mxu0
  %v560 = vadd.f32 %v546, %v559
  %v561 = vpop.f32.mrf.mxu0
  %v562 = vadd.f32 %v548, %v561
  %563 = vdwg.mxu0
  %564 = vmatpush.bf16.msra.mxu0 %v395
  %565 = vmatpush.bf16.msra.mxu0 %v393
  %566 = vmatpush.bf16.msra.mxu0 %v391
  %567 = vmatpush.bf16.msra.mxu0 %v389
  %568 = vmatpush.bf16.msra.mxu0 %v387
  %569 = vmatpush.bf16.msra.mxu0 %v385
  %570 = vmatpush.bf16.msra.mxu0 %v383
  %571 = vmatpush.bf16.msra.mxu0 %v381
  %572 = vmatmul.bf16.gmra.mxu0 %v180
  %v573 = vpop.f32.mrf.mxu0
  %v574 = vadd.f32 0.0, %v573
  %v575 = vpop.f32.mrf.mxu0
  %v576 = vadd.f32 0.0, %v575
  %577 = vdwg.mxu0
  %578 = vmatpush.bf16.msra.mxu0 %v411
  %579 = vmatpush.bf16.msra.mxu0 %v409
  %580 = vmatpush.bf16.msra.mxu0 %v407
  %581 = vmatpush.bf16.msra.mxu0 %v405
  %582 = vmatpush.bf16.msra.mxu0 %v403
  %583 = vmatpush.bf16.msra.mxu0 %v401
  %584 = vmatpush.bf16.msra.mxu0 %v399
  %585 = vmatpush.bf16.msra.mxu0 %v397
  %586 = vmatmul.bf16.gmra.mxu0 %v181
  %v587 = vpop.f32.mrf.mxu0
  %v588 = vadd.f32 %v574, %v587
  %v589 = vpop.f32.mrf.mxu0
  %v590 = vadd.f32 %v576, %v589
  %591 = vdwg.mxu0
  %592 = vmatpush.bf16.msra.mxu0 %v427
  %593 = vmatpush.bf16.msra.mxu0 %v425
  %594 = vmatpush.bf16.msra.mxu0 %v423
  %595 = vmatpush.bf16.msra.mxu0 %v421
  %596 = vmatpush.bf16.msra.mxu0 %v419
  %597 = vmatpush.bf16.msra.mxu0 %v417
  %598 = vmatpush.bf16.msra.mxu0 %v415
  %599 = vmatpush.bf16.msra.mxu0 %v413
  %600 = vmatmul.bf16.gmra.mxu0 %v182
  %v601 = vpop.f32.mrf.mxu0
  %v602 = vadd.f32 %v588, %v601
  %v603 = vpop.f32.mrf.mxu0
  %v604 = vadd.f32 %v590, %v603
  %605 = vdwg.mxu0
  %606 = vmatpush.bf16.msra.mxu0 %v443
  %607 = vmatpush.bf16.msra.mxu0 %v441
  %608 = vmatpush.bf16.msra.mxu0 %v439
  %609 = vmatpush.bf16.msra.mxu0 %v437
  %610 = vmatpush.bf16.msra.mxu0 %v435
  %611 = vmatpush.bf16.msra.mxu0 %v433
  %612 = vmatpush.bf16.msra.mxu0 %v431
  %613 = vmatpush.bf16.msra.mxu0 %v429
  %614 = vmatmul.bf16.gmra.mxu0 %v183
  %v615 = vpop.f32.mrf.mxu0
  %v616 = vadd.f32 %v602, %v615
  %v617 = vpop.f32.mrf.mxu0
  %v618 = vadd.f32 %v604, %v617
  %619 = vdwg.mxu0
  %v624 = vunpack.c.l.b16 %v32
  %v625 = vunpack.c.h.b16 %v32
  %v626 = vunpack.c.l.b16 %v33
  %v627 = vunpack.c.h.b16 %v33
  %v628 = vunpack.c.l.b16 %v34
  %v629 = vunpack.c.h.b16 %v34
  %v630 = vunpack.c.l.b16 %v35
  %v631 = vunpack.c.h.b16 %v35
  %v632 = vpack.c.b16 %v628, %v624
  %v633 = vpack.c.b16 %v629, %v625
  %v634 = vpack.c.b16 %v630, %v626
  %v635 = vpack.c.b16 %v631, %v627
  %v704 = vunpack.c.l.b16 %v36
  %v705 = vunpack.c.h.b16 %v36
  %v706 = vunpack.c.l.b16 %v37
  %v707 = vunpack.c.h.b16 %v37
  %v708 = vunpack.c.l.b16 %v38
  %v709 = vunpack.c.h.b16 %v38
  %v710 = vunpack.c.l.b16 %v39
  %v711 = vunpack.c.h.b16 %v39
  %v712 = vunpack.c.l.b16 %v40
  %v713 = vunpack.c.h.b16 %v40
  %v714 = vunpack.c.l.b16 %v41
  %v715 = vunpack.c.h.b16 %v41
  %v716 = vunpack.c.l.b16 %v42
  %v717 = vunpack.c.h.b16 %v42
  %v718 = vunpack.c.l.b16 %v43
  %v719 = vunpack.c.h.b16 %v43
  %v720 = vunpack.c.l.b16 %v44
  %v721 = vunpack.c.h.b16 %v44
  %v722 = vunpack.c.l.b16 %v45
  %v723 = vunpack.c.h.b16 %v45
  %v724 = vunpack.c.l.b16 %v46
  %v725 = vunpack.c.h.b16 %v46
  %v726 = vunpack.c.l.b16 %v47
  %v727 = vunpack.c.h.b16 %v47
  %v728 = vunpack.c.l.b16 %v48
  %v729 = vunpack.c.h.b16 %v48
  %v730 = vunpack.c.l.b16 %v49
  %v731 = vunpack.c.h.b16 %v49
  %v732 = vunpack.c.l.b16 %v50
  %v733 = vunpack.c.h.b16 %v50
  %v734 = vunpack.c.l.b16 %v51
  %v735 = vunpack.c.h.b16 %v51
  %v736 = vunpack.c.l.b16 %v52
  %v737 = vunpack.c.h.b16 %v52
  %v738 = vunpack.c.l.b16 %v53
  %v739 = vunpack.c.h.b16 %v53
  %v740 = vunpack.c.l.b16 %v54
  %v741 = vunpack.c.h.b16 %v54
  %v742 = vunpack.c.l.b16 %v55
  %v743 = vunpack.c.h.b16 %v55
  %v744 = vunpack.c.l.b16 %v56
  %v745 = vunpack.c.h.b16 %v56
  %v746 = vunpack.c.l.b16 %v57
  %v747 = vunpack.c.h.b16 %v57
  %v748 = vunpack.c.l.b16 %v58
  %v749 = vunpack.c.h.b16 %v58
  %v750 = vunpack.c.l.b16 %v59
  %v751 = vunpack.c.h.b16 %v59
  %v752 = vunpack.c.l.b16 %v60
  %v753 = vunpack.c.h.b16 %v60
  %v754 = vunpack.c.l.b16 %v61
  %v755 = vunpack.c.h.b16 %v61
  %v756 = vunpack.c.l.b16 %v62
  %v757 = vunpack.c.h.b16 %v62
  %v758 = vunpack.c.l.b16 %v63
  %v759 = vunpack.c.h.b16 %v63
  %v760 = vunpack.c.l.b16 %v64
  %v761 = vunpack.c.h.b16 %v64
  %v762 = vunpack.c.l.b16 %v65
  %v763 = vunpack.c.h.b16 %v65
  %v764 = vunpack.c.l.b16 %v66
  %v765 = vunpack.c.h.b16 %v66
  %v766 = vunpack.c.l.b16 %v67
  %v767 = vunpack.c.h.b16 %v67
  %v768 = vunpack.c.l.b16 %v68
  %v769 = vunpack.c.h.b16 %v68
  %v770 = vunpack.c.l.b16 %v69
  %v771 = vunpack.c.h.b16 %v69
  %v772 = vunpack.c.l.b16 %v70
  %v773 = vunpack.c.h.b16 %v70
  %v774 = vunpack.c.l.b16 %v71
  %v775 = vunpack.c.h.b16 %v71
  %v776 = vunpack.c.l.b16 %v72
  %v777 = vunpack.c.h.b16 %v72
  %v778 = vunpack.c.l.b16 %v73
  %v779 = vunpack.c.h.b16 %v73
  %v780 = vunpack.c.l.b16 %v74
  %v781 = vunpack.c.h.b16 %v74
  %v782 = vunpack.c.l.b16 %v75
  %v783 = vunpack.c.h.b16 %v75
  %v784 = vunpack.c.l.b16 %v76
  %v785 = vunpack.c.h.b16 %v76
  %v786 = vunpack.c.l.b16 %v77
  %v787 = vunpack.c.h.b16 %v77
  %v788 = vunpack.c.l.b16 %v78
  %v789 = vunpack.c.h.b16 %v78
  %v790 = vunpack.c.l.b16 %v79
  %v791 = vunpack.c.h.b16 %v79
  %v792 = vunpack.c.l.b16 %v80
  %v793 = vunpack.c.h.b16 %v80
  %v794 = vunpack.c.l.b16 %v81
  %v795 = vunpack.c.h.b16 %v81
  %v796 = vunpack.c.l.b16 %v82
  %v797 = vunpack.c.h.b16 %v82
  %v798 = vunpack.c.l.b16 %v83
  %v799 = vunpack.c.h.b16 %v83
  %v800 = vunpack.c.l.b16 %v84
  %v801 = vunpack.c.h.b16 %v84
  %v802 = vunpack.c.l.b16 %v85
  %v803 = vunpack.c.h.b16 %v85
  %v804 = vunpack.c.l.b16 %v86
  %v805 = vunpack.c.h.b16 %v86
  %v806 = vunpack.c.l.b16 %v87
  %v807 = vunpack.c.h.b16 %v87
  %v808 = vunpack.c.l.b16 %v88
  %v809 = vunpack.c.h.b16 %v88
  %v810 = vunpack.c.l.b16 %v89
  %v811 = vunpack.c.h.b16 %v89
  %v812 = vunpack.c.l.b16 %v90
  %v813 = vunpack.c.h.b16 %v90
  %v814 = vunpack.c.l.b16 %v91
  %v815 = vunpack.c.h.b16 %v91
  %v816 = vunpack.c.l.b16 %v92
  %v817 = vunpack.c.h.b16 %v92
  %v818 = vunpack.c.l.b16 %v93
  %v819 = vunpack.c.h.b16 %v93
  %v820 = vunpack.c.l.b16 %v94
  %v821 = vunpack.c.h.b16 %v94
  %v822 = vunpack.c.l.b16 %v95
  %v823 = vunpack.c.h.b16 %v95
  %v824 = vunpack.c.l.b16 %v96
  %v825 = vunpack.c.h.b16 %v96
  %v826 = vunpack.c.l.b16 %v97
  %v827 = vunpack.c.h.b16 %v97
  %v828 = vunpack.c.l.b16 %v98
  %v829 = vunpack.c.h.b16 %v98
  %v830 = vunpack.c.l.b16 %v99
  %v831 = vunpack.c.h.b16 %v99
  %v832 = vpack.c.b16 %v706, %v704
  %v833 = vpack.c.b16 %v707, %v705
  %v834 = vpack.c.b16 %v710, %v708
  %v835 = vpack.c.b16 %v711, %v709
  %v836 = vpack.c.b16 %v714, %v712
  %v837 = vpack.c.b16 %v715, %v713
  %v838 = vpack.c.b16 %v718, %v716
  %v839 = vpack.c.b16 %v719, %v717
  %v840 = vpack.c.b16 %v722, %v720
  %v841 = vpack.c.b16 %v723, %v721
  %v842 = vpack.c.b16 %v726, %v724
  %v843 = vpack.c.b16 %v727, %v725
  %v844 = vpack.c.b16 %v730, %v728
  %v845 = vpack.c.b16 %v731, %v729
  %v846 = vpack.c.b16 %v734, %v732
  %v847 = vpack.c.b16 %v735, %v733
  %v848 = vpack.c.b16 %v738, %v736
  %v849 = vpack.c.b16 %v739, %v737
  %v850 = vpack.c.b16 %v742, %v740
  %v851 = vpack.c.b16 %v743, %v741
  %v852 = vpack.c.b16 %v746, %v744
  %v853 = vpack.c.b16 %v747, %v745
  %v854 = vpack.c.b16 %v750, %v748
  %v855 = vpack.c.b16 %v751, %v749
  %v856 = vpack.c.b16 %v754, %v752
  %v857 = vpack.c.b16 %v755, %v753
  %v858 = vpack.c.b16 %v758, %v756
  %v859 = vpack.c.b16 %v759, %v757
  %v860 = vpack.c.b16 %v762, %v760
  %v861 = vpack.c.b16 %v763, %v761
  %v862 = vpack.c.b16 %v766, %v764
  %v863 = vpack.c.b16 %v767, %v765
  %v864 = vpack.c.b16 %v770, %v768
  %v865 = vpack.c.b16 %v771, %v769
  %v866 = vpack.c.b16 %v774, %v772
  %v867 = vpack.c.b16 %v775, %v773
  %v868 = vpack.c.b16 %v778, %v776
  %v869 = vpack.c.b16 %v779, %v777
  %v870 = vpack.c.b16 %v782, %v780
  %v871 = vpack.c.b16 %v783, %v781
  %v872 = vpack.c.b16 %v786, %v784
  %v873 = vpack.c.b16 %v787, %v785
  %v874 = vpack.c.b16 %v790, %v788
  %v875 = vpack.c.b16 %v791, %v789
  %v876 = vpack.c.b16 %v794, %v792
  %v877 = vpack.c.b16 %v795, %v793
  %v878 = vpack.c.b16 %v798, %v796
  %v879 = vpack.c.b16 %v799, %v797
  %v880 = vpack.c.b16 %v802, %v800
  %v881 = vpack.c.b16 %v803, %v801
  %v882 = vpack.c.b16 %v806, %v804
  %v883 = vpack.c.b16 %v807, %v805
  %v884 = vpack.c.b16 %v810, %v808
  %v885 = vpack.c.b16 %v811, %v809
  %v886 = vpack.c.b16 %v814, %v812
  %v887 = vpack.c.b16 %v815, %v813
  %v888 = vpack.c.b16 %v818, %v816
  %v889 = vpack.c.b16 %v819, %v817
  %v890 = vpack.c.b16 %v822, %v820
  %v891 = vpack.c.b16 %v823, %v821
  %v892 = vpack.c.b16 %v826, %v824
  %v893 = vpack.c.b16 %v827, %v825
  %v894 = vpack.c.b16 %v830, %v828
  %v895 = vpack.c.b16 %v831, %v829
  %960 = vmatpush.bf16.msra.mxu0 %v846
  %961 = vmatpush.bf16.msra.mxu0 %v844
  %962 = vmatpush.bf16.msra.mxu0 %v842
  %963 = vmatpush.bf16.msra.mxu0 %v840
  %964 = vmatpush.bf16.msra.mxu0 %v838
  %965 = vmatpush.bf16.msra.mxu0 %v836
  %966 = vmatpush.bf16.msra.mxu0 %v834
  %967 = vmatpush.bf16.msra.mxu0 %v832
  %968 = vmatmul.bf16.gmra.mxu0 %v632
  %v969 = vpop.f32.mrf.mxu0
  %v970 = vadd.f32 %v560, %v969
  %v971 = vpop.f32.mrf.mxu0
  %v972 = vadd.f32 %v562, %v971
  %973 = vdwg.mxu0
  %974 = vmatpush.bf16.msra.mxu0 %v862
  %975 = vmatpush.bf16.msra.mxu0 %v860
  %976 = vmatpush.bf16.msra.mxu0 %v858
  %977 = vmatpush.bf16.msra.mxu0 %v856
  %978 = vmatpush.bf16.msra.mxu0 %v854
  %979 = vmatpush.bf16.msra.mxu0 %v852
  %980 = vmatpush.bf16.msra.mxu0 %v850
  %981 = vmatpush.bf16.msra.mxu0 %v848
  %982 = vmatmul.bf16.gmra.mxu0 %v633
  %v983 = vpop.f32.mrf.mxu0
  %v984 = vadd.f32 %v970, %v983
  %v985 = vpop.f32.mrf.mxu0
  %v986 = vadd.f32 %v972, %v985
  %987 = vdwg.mxu0
  %988 = vmatpush.bf16.msra.mxu0 %v878
  %989 = vmatpush.bf16.msra.mxu0 %v876
  %990 = vmatpush.bf16.msra.mxu0 %v874
  %991 = vmatpush.bf16.msra.mxu0 %v872
  %992 = vmatpush.bf16.msra.mxu0 %v870
  %993 = vmatpush.bf16.msra.mxu0 %v868
  %994 = vmatpush.bf16.msra.mxu0 %v866
  %995 = vmatpush.bf16.msra.mxu0 %v864
  %996 = vmatmul.bf16.gmra.mxu0 %v634
  %v997 = vpop.f32.mrf.mxu0
  %v998 = vadd.f32 %v984, %v997
  %v999 = vpop.f32.mrf.mxu0
  %v1000 = vadd.f32 %v986, %v999
  %1001 = vdwg.mxu0
  %1002 = vmatpush.bf16.msra.mxu0 %v894
  %1003 = vmatpush.bf16.msra.mxu0 %v892
  %1004 = vmatpush.bf16.msra.mxu0 %v890
  %1005 = vmatpush.bf16.msra.mxu0 %v888
  %1006 = vmatpush.bf16.msra.mxu0 %v886
  %1007 = vmatpush.bf16.msra.mxu0 %v884
  %1008 = vmatpush.bf16.msra.mxu0 %v882
  %1009 = vmatpush.bf16.msra.mxu0 %v880
  %1010 = vmatmul.bf16.gmra.mxu0 %v635
  %v1011 = vpop.f32.mrf.mxu0
  %v1012 = vadd.f32 %v998, %v1011
  %v1013 = vpop.f32.mrf.mxu0
  %v1014 = vadd.f32 %v1000, %v1013
  %1015 = vdwg.mxu0
  %1016 = vmatpush.bf16.msra.mxu0 %v847
  %1017 = vmatpush.bf16.msra.mxu0 %v845
  %1018 = vmatpush.bf16.msra.mxu0 %v843
  %1019 = vmatpush.bf16.msra.mxu0 %v841
  %1020 = vmatpush.bf16.msra.mxu0 %v839
  %1021 = vmatpush.bf16.msra.mxu0 %v837
  %1022 = vmatpush.bf16.msra.mxu0 %v835
  %1023 = vmatpush.bf16.msra.mxu0 %v833
  %1024 = vmatmul.bf16.gmra.mxu0 %v632
  %v1025 = vpop.f32.mrf.mxu0
  %v1026 = vadd.f32 %v616, %v1025
  %v1027 = vpop.f32.mrf.mxu0
  %v1028 = vadd.f32 %v618, %v1027
  %1029 = vdwg.mxu0
  %1030 = vmatpush.bf16.msra.mxu0 %v863
  %1031 = vmatpush.bf16.msra.mxu0 %v861
  %1032 = vmatpush.bf16.msra.mxu0 %v859
  %1033 = vmatpush.bf16.msra.mxu0 %v857
  %1034 = vmatpush.bf16.msra.mxu0 %v855
  %1035 = vmatpush.bf16.msra.mxu0 %v853
  %1036 = vmatpush.bf16.msra.mxu0 %v851
  %1037 = vmatpush.bf16.msra.mxu0 %v849
  %1038 = vmatmul.bf16.gmra.mxu0 %v633
  %v1039 = vpop.f32.mrf.mxu0
  %v1040 = vadd.f32 %v1026, %v1039
  %v1041 = vpop.f32.mrf.mxu0
  %v1042 = vadd.f32 %v1028, %v1041
  %1043 = vdwg.mxu0
  %1044 = vmatpush.bf16.msra.mxu0 %v879
  %1045 = vmatpush.bf16.msra.mxu0 %v877
  %1046 = vmatpush.bf16.msra.mxu0 %v875
  %1047 = vmatpush.bf16.msra.mxu0 %v873
  %1048 = vmatpush.bf16.msra.mxu0 %v871
  %1049 = vmatpush.bf16.msra.mxu0 %v869
  %1050 = vmatpush.bf16.msra.mxu0 %v867
  %1051 = vmatpush.bf16.msra.mxu0 %v865
  %1052 = vmatmul.bf16.gmra.mxu0 %v634
  %v1053 = vpop.f32.mrf.mxu0
  %v1054 = vadd.f32 %v1040, %v1053
  %v1055 = vpop.f32.mrf.mxu0
  %v1056 = vadd.f32 %v1042, %v1055
  %1057 = vdwg.mxu0
  %1058 = vmatpush.bf16.msra.mxu0 %v895
  %1059 = vmatpush.bf16.msra.mxu0 %v893
  %1060 = vmatpush.bf16.msra.mxu0 %v891
  %1061 = vmatpush.bf16.msra.mxu0 %v889
  %1062 = vmatpush.bf16.msra.mxu0 %v887
  %1063 = vmatpush.bf16.msra.mxu0 %v885
  %1064 = vmatpush.bf16.msra.mxu0 %v883
  %1065 = vmatpush.bf16.msra.mxu0 %v881
  %1066 = vmatmul.bf16.gmra.mxu0 %v635
  %v1067 = vpop.f32.mrf.mxu0
  %v1068 = vadd.f32 %v1054, %v1067
  %v1069 = vpop.f32.mrf.mxu0
  %v1070 = vadd.f32 %v1056, %v1069
  %1071 = vdwg.mxu0
  %v1072 = vld [vmem:[%s2] sm:$0xff]
  %v1073 = vld [vmem:[%s2 + $0x8] sm:$0xff]
  %v1074 = vld [vmem:[%s5] sm:$0xf]
  %1076 = vset.pattern.permute.xlu0 1
  %1077 = vperm.xlu0 %1076, %v1072
  %v1078 = vpop.permute.xlu0 %1077
  %1081 = vset.pattern.permute.xlu0 1
  %1082 = vperm.xlu0 %1081, %v1073
  %v1083 = vpop.permute.xlu0 %1082
  %v1086 = vperm.slane %v1074, 0
  %v1087 = vperm.slane %v1074, 2
  %v1090 = vperm.slane %v1086, 0
  %v1091 = vperm.slane %v1087, 0
  %v1092 = vmul.f32 %v1078, %v1090
  %v1093 = vmul.f32 %v1078, %v1091
  %v1094 = vmul.f32 %v1083, %v1090
  %v1095 = vmul.f32 %v1083, %v1091
  %1096 = vset.pattern.permute.xlu0 2
  %1097 = vperm.xlu0 %1096, %v1072
  %v1098 = vpop.permute.xlu0 %1097
  %1100 = vset.pattern.permute.xlu0 2
  %1101 = vperm.xlu0 %1100, %v1073
  %v1102 = vpop.permute.xlu0 %1101
  %v1104 = vperm.slane %v1074, 1
  %v1105 = vperm.slane %v1074, 3
  %v1108 = vperm.slane %v1104, 1
  %v1109 = vperm.slane %v1105, 1
  %v1110 = vmul.f32 %v1098, %v1108
  %v1111 = vmul.f32 %v1098, %v1109
  %v1112 = vmul.f32 %v1102, %v1108
  %v1113 = vmul.f32 %v1102, %v1109
  %v1114 = vadd.f32 %v1092, %v1110
  %v1115 = vadd.f32 %v1093, %v1111
  %v1116 = vadd.f32 %v1094, %v1112
  %v1117 = vadd.f32 %v1095, %v1113
  %1118 = vset.pattern.permute.xlu0 0
  %1119 = vperm.xlu0 %1118, %v1072
  %v1120 = vpop.permute.xlu0 %1119
  %1122 = vset.pattern.permute.xlu0 0
  %1123 = vperm.xlu0 %1122, %v1073
  %v1124 = vpop.permute.xlu0 %1123
  %v1126 = vmul.f32 %v1120, %v1012
  %v1127 = vmul.f32 %v1120, %v1068
  %v1128 = vmul.f32 %v1124, %v1014
  %v1129 = vmul.f32 %v1124, %v1070
  %v1130 = vadd.f32 %v1126, %v1114
  %v1131 = vadd.f32 %v1127, %v1115
  %v1132 = vadd.f32 %v1128, %v1116
  %v1133 = vadd.f32 %v1129, %v1117
  %v1134 = vld [vmem:[%s6] sm:$0x3]
  %v1136 = vperm.slane %v1134, 0
  %v1137 = vperm.slane %v1134, 1
  %v1140 = vadd.f32 %v1130, %v1136
  %v1141 = vadd.f32 %v1131, %v1137
  %v1142 = vadd.f32 %v1132, %v1136
  %v1143 = vadd.f32 %v1133, %v1137
  %v1144 = vmax.f32 %v1140, 0.0
  %v1145 = vmax.f32 %v1141, 0.0
  %v1146 = vmax.f32 %v1142, 0.0
  %v1147 = vmax.f32 %v1143, 0.0
  %v1148 = vpack.c.bf16 %v1146, %v1144
  %v1149 = vpack.c.bf16 %v1147, %v1145
  %v1150 = vld [vmem:[%s7] sm:$0xf]
  %v1151 = vld [vmem:[%s7 + $0x4] sm:$0xf]
  %v1152 = vld [vmem:[%s7 + $0x8] sm:$0xf]
  %v1153 = vld [vmem:[%s7 + $0xc] sm:$0xf]
  %v1154 = vld [vmem:[%s7 + $0x10] sm:$0xf]
  %v1155 = vld [vmem:[%s7 + $0x14] sm:$0xf]
  %v1156 = vld [vmem:[%s7 + $0x18] sm:$0xf]
  %v1157 = vld [vmem:[%s7 + $0x1c] sm:$0xf]
  %v1158 = vld [vmem:[%s7 + $0x20] sm:$0xf]
  %v1159 = vld [vmem:[%s7 + $0x24] sm:$0xf]
  %v1160 = vld [vmem:[%s7 + $0x28] sm:$0xf]
  %v1161 = vld [vmem:[%s7 + $0x2c] sm:$0xf]
  %v1162 = vld [vmem:[%s7 + $0x30] sm:$0xf]
  %v1163 = vld [vmem:[%s7 + $0x34] sm:$0xf]
  %v1164 = vld [vmem:[%s7 + $0x38] sm:$0xf]
  %v1165 = vld [vmem:[%s7 + $0x3c] sm:$0xf]
  %v1166 = vld [vmem:[%s7 + $0x40] sm:$0xf]
  %v1167 = vld [vmem:[%s7 + $0x44] sm:$0xf]
  %v1168 = vld [vmem:[%s7 + $0x48] sm:$0xf]
  %v1169 = vld [vmem:[%s7 + $0x4c] sm:$0xf]
  %v1170 = vld [vmem:[%s7 + $0x50] sm:$0xf]
  %v1171 = vld [vmem:[%s7 + $0x54] sm:$0xf]
  %v1172 = vld [vmem:[%s7 + $0x58] sm:$0xf]
  %v1173 = vld [vmem:[%s7 + $0x5c] sm:$0xf]
  %v1174 = vld [vmem:[%s7 + $0x60] sm:$0xf]
  %v1175 = vld [vmem:[%s7 + $0x64] sm:$0xf]
  %v1176 = vld [vmem:[%s7 + $0x68] sm:$0xf]
  %v1177 = vld [vmem:[%s7 + $0x6c] sm:$0xf]
  %v1178 = vld [vmem:[%s7 + $0x70] sm:$0xf]
  %v1179 = vld [vmem:[%s7 + $0x74] sm:$0xf]
  %v1180 = vld [vmem:[%s7 + $0x78] sm:$0xf]
  %v1181 = vld [vmem:[%s7 + $0x7c] sm:$0xf]
  %v1182 = vld [vmem:[%s8] sm:$0x1]
  %v1184 = vperm.slane %v1182, 0
  %v1218 = vunpack.c.l.b16 %v1150
  %v1219 = vunpack.c.l.b16 %v1151
  %v1220 = vunpack.c.l.b16 %v1152
  %v1221 = vunpack.c.l.b16 %v1153
  %v1222 = vunpack.c.l.b16 %v1154
  %v1223 = vunpack.c.l.b16 %v1155
  %v1224 = vunpack.c.l.b16 %v1156
  %v1225 = vunpack.c.l.b16 %v1157
  %v1226 = vunpack.c.l.b16 %v1158
  %v1227 = vunpack.c.l.b16 %v1159
  %v1228 = vunpack.c.l.b16 %v1160
  %v1229 = vunpack.c.l.b16 %v1161
  %v1230 = vunpack.c.l.b16 %v1162
  %v1231 = vunpack.c.l.b16 %v1163
  %v1232 = vunpack.c.l.b16 %v1164
  %v1233 = vunpack.c.l.b16 %v1165
  %v1234 = vunpack.c.l.b16 %v1166
  %v1235 = vunpack.c.l.b16 %v1167
  %v1236 = vunpack.c.l.b16 %v1168
  %v1237 = vunpack.c.l.b16 %v1169
  %v1238 = vunpack.c.l.b16 %v1170
  %v1239 = vunpack.c.l.b16 %v1171
  %v1240 = vunpack.c.l.b16 %v1172
  %v1241 = vunpack.c.l.b16 %v1173
  %v1242 = vunpack.c.l.b16 %v1174
  %v1243 = vunpack.c.l.b16 %v1175
  %v1244 = vunpack.c.l.b16 %v1176
  %v1245 = vunpack.c.l.b16 %v1177
  %v1246 = vunpack.c.l.b16 %v1178
  %v1247 = vunpack.c.l.b16 %v1179
  %v1248 = vunpack.c.l.b16 %v1180
  %v1249 = vunpack.c.l.b16 %v1181
  %v1250 = vpack.c.b16 %v1219, %v1218
  %v1251 = vpack.c.b16 %v1221, %v1220
  %v1252 = vpack.c.b16 %v1223, %v1222
  %v1253 = vpack.c.b16 %v1225, %v1224
  %v1254 = vpack.c.b16 %v1227, %v1226
  %v1255 = vpack.c.b16 %v1229, %v1228
  %v1256 = vpack.c.b16 %v1231, %v1230
  %v1257 = vpack.c.b16 %v1233, %v1232
  %v1258 = vpack.c.b16 %v1235, %v1234
  %v1259 = vpack.c.b16 %v1237, %v1236
  %v1260 = vpack.c.b16 %v1239, %v1238
  %v1261 = vpack.c.b16 %v1241, %v1240
  %v1262 = vpack.c.b16 %v1243, %v1242
  %v1263 = vpack.c.b16 %v1245, %v1244
  %v1264 = vpack.c.b16 %v1247, %v1246
  %v1265 = vpack.c.b16 %v1249, %v1248
  %1282 = vmatpush.bf16.msra.mxu0 %v1257
  %1283 = vmatpush.bf16.msra.mxu0 %v1256
  %1284 = vmatpush.bf16.msra.mxu0 %v1255
  %1285 = vmatpush.bf16.msra.mxu0 %v1254
  %1286 = vmatpush.bf16.msra.mxu0 %v1253
  %1287 = vmatpush.bf16.msra.mxu0 %v1252
  %1288 = vmatpush.bf16.msra.mxu0 %v1251
  %1289 = vmatpush.bf16.msra.mxu0 %v1250
  %1290 = vmatmul.bf16.gmra.mxu0 %v1148
  %v1291 = vpop.f32.mrf.mxu0
  %v1292 = vadd.f32 %v1184, %v1291
  %v1293 = vpop.f32.mrf.mxu0
  %v1294 = vadd.f32 %v1184, %v1293
  %1295 = vdwg.mxu0
  %1296 = vmatpush.bf16.msra.mxu0 %v1265
  %1297 = vmatpush.bf16.msra.mxu0 %v1264
  %1298 = vmatpush.bf16.msra.mxu0 %v1263
  %1299 = vmatpush.bf16.msra.mxu0 %v1262
  %1300 = vmatpush.bf16.msra.mxu0 %v1261
  %1301 = vmatpush.bf16.msra.mxu0 %v1260
  %1302 = vmatpush.bf16.msra.mxu0 %v1259
  %1303 = vmatpush.bf16.msra.mxu0 %v1258
  %1304 = vmatmul.bf16.gmra.mxu0 %v1149
  %v1305 = vpop.f32.mrf.mxu0
  %v1306 = vadd.f32 %v1292, %v1305
  %v1307 = vpop.f32.mrf.mxu0
  %v1308 = vadd.f32 %v1294, %v1307
  %1309 = vdwg.mxu0
  %v1310 = vmul.f32 %v1306, %v1306
  %v1311 = vmul.f32 %v1308, %v1308
  %1312 = vadd.xlane.f32.xlu0 %v1310
  %v1313 = vpop.xlane.xlu0 %1312
  %1314 = vadd.xlane.f32.xlu0 %v1311
  %v1315 = vpop.xlane.xlu0 %1314
  %v1316 = vmax.f32 %v1313, 1e-24
  %v1317 = vmax.f32 %v1315, 1e-24
  %v1318 = vrsqrt.pop %v1316
  %v1319 = vmul.f32 %v1318, %v1316
  %v1320 = vmul.f32 %v1319, %v1318
  %v1321 = vmul.f32 0.5, %v1320
  %v1322 = vsub.f32 1.5, %v1321
  %v1323 = vmul.f32 %v1318, %v1322
  %vm1324 = vweird.f32 %v1316
  %vm1325 = vweird.f32 %v1318
  %vm1326 = vmor %vm1324, %vm1325
  %v1327 = vsel %vm1326, %v1318, %v1323
  %v1328 = vrsqrt.pop %v1317
  %v1329 = vmul.f32 %v1328, %v1317
  %v1330 = vmul.f32 %v1329, %v1328
  %v1331 = vmul.f32 0.5, %v1330
  %v1332 = vsub.f32 1.5, %v1331
  %v1333 = vmul.f32 %v1328, %v1332
  %vm1334 = vweird.f32 %v1317
  %vm1335 = vweird.f32 %v1328
  %vm1336 = vmor %vm1334, %vm1335
  %v1337 = vsel %vm1336, %v1328, %v1333
  %v1338 = vmul.f32 %v1306, %v1327
  %v1339 = vmul.f32 %v1308, %v1337
  %1340 = vst [vmem:[%s9] sm:$0xff] %v1338
  %1341 = vst [vmem:[%s9 + $0x8] sm:$0xff] %v1339
  // Predicated region
  $region38: #{gaze_dir_forward.1} parent=0 // pred_check
    _
  $region39: #{gaze_dir_forward.1} parent=0 // pred_check_branch
    %1343 = sbr.rel (0) target = $region41
  $region40: #{gaze_dir_forward.1} parent=0 // pred_region
    _
  $region41: #{gaze_dir_forward.1} parent=0 // pred_fallthru
    _
  // Predicated region
  $region42: #{gaze_dir_forward.1} parent=0 // pred_check
    _
  $region43: #{gaze_dir_forward.1} parent=0 // pred_check_branch
    %1345 = sbr.rel (0) target = $region45
  $region44: #{gaze_dir_forward.1} parent=0 // pred_region
    _
  $region45: #{gaze_dir_forward.1} parent=0 // pred_fallthru
    _

</llo_original>
